<compile_context>
chip_gen: v5e
topology: v5e:2x2
jax: 0.10.0
libtpu: 0.0.40
codegen_flags: <defaults>
</compile_context>

<pallas_src>
import jax
import jax.numpy as jnp
from jax.experimental import pallas as pl
from jax.experimental.pallas import tpu as pltpu


# Layer sizes of the autoencoder (encoder then decoder).
LAYER_SIZES = [28 * 28, 128, 64, 12, 3, 12, 64, 128, 28 * 28]
N_LAYERS = len(LAYER_SIZES) - 1  # 8 linear layers

# Activation applied AFTER each linear layer (matches the PyTorch module:
# note the encoder's final Linear(12, 3) has no activation).
ACTIVATIONS = ("relu", "relu", "relu", None, "relu", "relu", "relu", "tanh")

LANE = 128
D_IN = LAYER_SIZES[0]                      # 784
D_PAD = ((D_IN + LANE - 1) // LANE) * LANE  # 896 (lane-dense I/O)


def _round_up(x, m):
    return ((x + m - 1) // m) * m


def autoencoder_kernel(x_ref, *refs):
    """Full forward pass of the MLP autoencoder on one batch tile.

    refs layout: w1, b1, w2, b2, ..., w8, b8, o_ref
      wi: (in_i, out_i) bf16   bi: (1, out_i) f32
    x_ref: (TB, 896) f32, o_ref: (TB, 896) f32.
    """
    o_ref = refs[-1]
    param_refs = refs[:-1]

    h = x_ref[...]                                   # (TB, 896) f32
    for layer in range(N_LAYERS):
        w = param_refs[2 * layer][...]               # bf16 (in, out)
        b = param_refs[2 * layer + 1][...]           # f32  (1, out)
        # bf16 x bf16 -> f32 accumulate on the MXU; bias add / activations
        # stay f32 on the VPU/EUP.
        h = jnp.dot(h.astype(jnp.bfloat16), w,
                    preferred_element_type=jnp.float32) + b
        act = ACTIVATIONS[layer]
        if act == "relu":
            h = jnp.maximum(h, 0.0)
        elif act == "tanh":
            h = jnp.tanh(h)
    o_ref[...] = h.astype(o_ref.dtype)


def prepare_params(params):
    """One-time (wrapper-side) param prep: pad + cast.

    params: list of (W, b) with W (in_features, out_features) — i.e. the
    transpose of PyTorch's nn.Linear weight — and b (1, out_features).

    Returns flat [w1, b1, ..., w8, b8] where:
      * W1 rows are zero-padded 784 -> 896 (matches zero-padded x columns),
      * W8 / b8 output columns are zero-padded 784 -> 896 (sliced off later),
      * weights are bf16, biases are f32.
    """
    flat = []
    for i, (w, b) in enumerate(params):
        if i == 0:
            w = jnp.pad(w, ((0, D_PAD - D_IN), (0, 0)))
        if i == N_LAYERS - 1:
            w = jnp.pad(w, ((0, 0), (0, D_PAD - D_IN)))
            b = jnp.pad(b, ((0, 0), (0, D_PAD - D_IN)))
        flat.append(w.astype(jnp.bfloat16))
        flat.append(b.astype(jnp.float32))
    return flat


def autoencoder_forward(x, flat_params, block_b=None):
    """x: (B, 784) float. flat_params: output of prepare_params."""
    B, D = x.shape
    assert D == D_IN, D

    # Batch tile: fill the MXU (>=128, ideally 256-512) for large B; for tiny
    # demo batches just round up to the sublane multiple of 8.
    if block_b is None:
        block_b = 256 if B >= 256 else _round_up(max(B, 8), 8)
    b_pad = _round_up(B, block_b)

    x_p = jnp.pad(x.astype(jnp.float32),
                  ((0, b_pad - B), (0, D_PAD - D_IN)))

    grid = (b_pad // block_b,)

    # x / out are tiled along the batch; weights/biases are full-array blocks
    # with a constant index_map so they stay resident in VMEM across steps.
    in_specs = [pl.BlockSpec((block_b, D_PAD), lambda i: (i, 0))]
    for p in flat_params:
        in_specs.append(pl.BlockSpec(p.shape, lambda i: (0, 0)))
    out_specs = pl.BlockSpec((block_b, D_PAD), lambda i: (i, 0))

    flops = 2 * b_pad * sum(
        LAYER_SIZES[i] * LAYER_SIZES[i + 1] for i in range(N_LAYERS))
    param_bytes = sum(int(p.size) * p.dtype.itemsize for p in flat_params)
    cost = pl.CostEstimate(
        flops=flops,
        transcendentals=b_pad * D_PAD,                 # final tanh
        bytes_accessed=int(x_p.size) * 4 + b_pad * D_PAD * 4 + param_bytes,
    )

    out = pl.pallas_call(
        autoencoder_kernel,
        out_shape=jax.ShapeDtypeStruct((b_pad, D_PAD), jnp.float32),
        grid_spec=pltpu.PrefetchScalarGridSpec(
            num_scalar_prefetch=0,
            grid=grid,
            in_specs=in_specs,
            out_specs=out_specs,
        ),
        compiler_params=pltpu.CompilerParams(
            dimension_semantics=("parallel",),   # megacore / v7x 2-TC sharding
        ),
        cost_estimate=cost,
    )(x_p, *flat_params)

    # Strip batch padding and the 784->896 lane padding.
    return out[:B, :D_IN]


def init_params(key):
    """PyTorch nn.Linear default init: U(-1/sqrt(fan_in), 1/sqrt(fan_in))."""
    params = []
    for i in range(N_LAYERS):
        fan_in = LAYER_SIZES[i]
        fan_out = LAYER_SIZES[i + 1]
        key, kw, kb = jax.random.split(key, 3)
        bound = 1.0 / jnp.sqrt(float(fan_in))
        # PyTorch stores weight as (out, in); we store the transpose (in, out).
        w = jax.random.uniform(kw, (fan_in, fan_out), jnp.float32, -bound, bound)
        b = jax.random.uniform(kb, (1, fan_out), jnp.float32, -bound, bound)
        params.append((w, b))
    return params


def reference_forward(x, params):
    """Pure-JAX f32 reference (exactly the PyTorch forward semantics)."""
    h = x
    for layer, (w, b) in enumerate(params):
        h = h @ w + b
        act = ACTIVATIONS[layer]
        if act == "relu":
            h = jnp.maximum(h, 0.0)
        elif act == "tanh":
            h = jnp.tanh(h)
    return h


if __name__ == "__main__":
    key = jax.random.PRNGKey(0)
    key, kx = jax.random.split(key)

    params = init_params(key)
    flat_params = prepare_params(params)

    # Small demo batches; the second one exercises batch padding (37 -> 40).
    for B in (8, 37):
        kx, k = jax.random.split(kx)
        x = jax.random.normal(k, (B, D_IN), jnp.float32)

        out = jax.block_until_ready(autoencoder_forward(x, flat_params))
        ref = reference_forward(x, params)

        assert out.shape == (B, D_IN), out.shape
        max_err = float(jnp.max(jnp.abs(out - ref)))
        # bf16 matmul operands vs f32 reference -> relaxed tolerance.
        assert max_err < 3e-2, max_err

    print("KERNEL_OK")
</pallas_src>

<mosaic_0001>
module attributes {stable_mosaic.version = 11 : i64} {
  func.func @autoencoder_kernel(%arg0: i32, %arg1: memref<8x896xf32, #tpu.memory_space<vmem>>, %arg2: memref<896x128xbf16, #tpu.memory_space<vmem>>, %arg3: memref<1x128xf32, #tpu.memory_space<vmem>>, %arg4: memref<128x64xbf16, #tpu.memory_space<vmem>>, %arg5: memref<1x64xf32, #tpu.memory_space<vmem>>, %arg6: memref<64x12xbf16, #tpu.memory_space<vmem>>, %arg7: memref<1x12xf32, #tpu.memory_space<vmem>>, %arg8: memref<12x3xbf16, #tpu.memory_space<vmem>>, %arg9: memref<1x3xf32, #tpu.memory_space<vmem>>, %arg10: memref<3x12xbf16, #tpu.memory_space<vmem>>, %arg11: memref<1x12xf32, #tpu.memory_space<vmem>>, %arg12: memref<12x64xbf16, #tpu.memory_space<vmem>>, %arg13: memref<1x64xf32, #tpu.memory_space<vmem>>, %arg14: memref<64x128xbf16, #tpu.memory_space<vmem>>, %arg15: memref<1x128xf32, #tpu.memory_space<vmem>>, %arg16: memref<128x896xbf16, #tpu.memory_space<vmem>>, %arg17: memref<1x896xf32, #tpu.memory_space<vmem>>, %arg18: memref<8x896xf32, #tpu.memory_space<vmem>>) attributes {dimension_semantics = [#tpu.dimension_semantics<parallel>], iteration_bounds = array<i64: 1>, scalar_prefetch = 0 : i64, scratch_operands = 0 : i64, tpu.core_type = #tpu.core_type<tc>, window_params = [{transform_indices = @transform_0, window_bounds = array<i64: 8, 896>}, {pipeline_mode = #tpu.pipeline_mode<synchronous>, transform_indices = @transform_1, window_bounds = array<i64: 896, 128>}, {pipeline_mode = #tpu.pipeline_mode<synchronous>, transform_indices = @transform_2, window_bounds = array<i64: 1, 128>}, {pipeline_mode = #tpu.pipeline_mode<synchronous>, transform_indices = @transform_3, window_bounds = array<i64: 128, 64>}, {pipeline_mode = #tpu.pipeline_mode<synchronous>, transform_indices = @transform_4, window_bounds = array<i64: 1, 64>}, {pipeline_mode = #tpu.pipeline_mode<synchronous>, transform_indices = @transform_5, window_bounds = array<i64: 64, 12>}, {pipeline_mode = #tpu.pipeline_mode<synchronous>, transform_indices = @transform_6, window_bounds = array<i64: 1, 12>}, {pipeline_mode = #tpu.pipeline_mode<synchronous>, transform_indices = @transform_7, window_bounds = array<i64: 12, 3>}, {pipeline_mode = #tpu.pipeline_mode<synchronous>, transform_indices = @transform_8, window_bounds = array<i64: 1, 3>}, {pipeline_mode = #tpu.pipeline_mode<synchronous>, transform_indices = @transform_9, window_bounds = array<i64: 3, 12>}, {pipeline_mode = #tpu.pipeline_mode<synchronous>, transform_indices = @transform_10, window_bounds = array<i64: 1, 12>}, {pipeline_mode = #tpu.pipeline_mode<synchronous>, transform_indices = @transform_11, window_bounds = array<i64: 12, 64>}, {pipeline_mode = #tpu.pipeline_mode<synchronous>, transform_indices = @transform_12, window_bounds = array<i64: 1, 64>}, {pipeline_mode = #tpu.pipeline_mode<synchronous>, transform_indices = @transform_13, window_bounds = array<i64: 64, 128>}, {pipeline_mode = #tpu.pipeline_mode<synchronous>, transform_indices = @transform_14, window_bounds = array<i64: 1, 128>}, {pipeline_mode = #tpu.pipeline_mode<synchronous>, transform_indices = @transform_15, window_bounds = array<i64: 128, 896>}, {pipeline_mode = #tpu.pipeline_mode<synchronous>, transform_indices = @transform_16, window_bounds = array<i64: 1, 896>}, {transform_indices = @transform_17, window_bounds = array<i64: 8, 896>}]} {
    %c0 = arith.constant 0 : index
    %c0_0 = arith.constant 0 : index
    %0 = vector.load %arg1[%c0, %c0_0] : memref<8x896xf32, #tpu.memory_space<vmem>>, vector<8x896xf32>
    %c0_1 = arith.constant 0 : index
    %c0_2 = arith.constant 0 : index
    %1 = vector.load %arg2[%c0_1, %c0_2] : memref<896x128xbf16, #tpu.memory_space<vmem>>, vector<896x128xbf16>
    %c0_3 = arith.constant 0 : index
    %c0_4 = arith.constant 0 : index
    %2 = vector.load %arg3[%c0_3, %c0_4] : memref<1x128xf32, #tpu.memory_space<vmem>>, vector<1x128xf32>
    %3 = arith.truncf %0 : vector<8x896xf32> to vector<8x896xbf16>
    %cst = arith.constant dense<0.000000e+00> : vector<8x128xf32>
    %4 = tpu.matmul %3, %1, %cst {dimension_numbers = #tpu.dot_dimension_numbers<[1], [0], [0], [1], [0, 0, 1, 1], [], []>} : vector<8x896xbf16>, vector<896x128xbf16>, vector<8x128xf32> -> vector<8x128xf32>
    %5 = vector.broadcast %2 : vector<1x128xf32> to vector<8x128xf32>
    %6 = arith.addf %4, %5 : vector<8x128xf32>
    %cst_5 = arith.constant 0.000000e+00 : f32
    %7 = vector.broadcast %cst_5 : f32 to vector<8x128xf32>
    %8 = arith.maximumf %6, %7 : vector<8x128xf32>
    %c0_6 = arith.constant 0 : index
    %c0_7 = arith.constant 0 : index
    %9 = vector.load %arg4[%c0_6, %c0_7] : memref<128x64xbf16, #tpu.memory_space<vmem>>, vector<128x64xbf16>
    %c0_8 = arith.constant 0 : index
    %c0_9 = arith.constant 0 : index
    %10 = vector.load %arg5[%c0_8, %c0_9] : memref<1x64xf32, #tpu.memory_space<vmem>>, vector<1x64xf32>
    %11 = arith.truncf %8 : vector<8x128xf32> to vector<8x128xbf16>
    %cst_10 = arith.constant dense<0.000000e+00> : vector<8x64xf32>
    %12 = tpu.matmul %11, %9, %cst_10 {dimension_numbers = #tpu.dot_dimension_numbers<[1], [0], [0], [1], [0, 0, 1, 1], [], []>} : vector<8x128xbf16>, vector<128x64xbf16>, vector<8x64xf32> -> vector<8x64xf32>
    %13 = vector.broadcast %10 : vector<1x64xf32> to vector<8x64xf32>
    %14 = arith.addf %12, %13 : vector<8x64xf32>
    %cst_11 = arith.constant 0.000000e+00 : f32
    %15 = vector.broadcast %cst_11 : f32 to vector<8x64xf32>
    %16 = arith.maximumf %14, %15 : vector<8x64xf32>
    %c0_12 = arith.constant 0 : index
    %c0_13 = arith.constant 0 : index
    %17 = vector.load %arg6[%c0_12, %c0_13] : memref<64x12xbf16, #tpu.memory_space<vmem>>, vector<64x12xbf16>
    %c0_14 = arith.constant 0 : index
    %c0_15 = arith.constant 0 : index
    %18 = vector.load %arg7[%c0_14, %c0_15] : memref<1x12xf32, #tpu.memory_space<vmem>>, vector<1x12xf32>
    %19 = arith.truncf %16 : vector<8x64xf32> to vector<8x64xbf16>
    %cst_16 = arith.constant dense<0.000000e+00> : vector<8x12xf32>
    %20 = tpu.matmul %19, %17, %cst_16 {dimension_numbers = #tpu.dot_dimension_numbers<[1], [0], [0], [1], [0, 0, 1, 1], [], []>} : vector<8x64xbf16>, vector<64x12xbf16>, vector<8x12xf32> -> vector<8x12xf32>
    %21 = vector.broadcast %18 : vector<1x12xf32> to vector<8x12xf32>
    %22 = arith.addf %20, %21 : vector<8x12xf32>
    %cst_17 = arith.constant 0.000000e+00 : f32
    %23 = vector.broadcast %cst_17 : f32 to vector<8x12xf32>
    %24 = arith.maximumf %22, %23 : vector<8x12xf32>
    %c0_18 = arith.constant 0 : index
    %c0_19 = arith.constant 0 : index
    %25 = vector.load %arg8[%c0_18, %c0_19] : memref<12x3xbf16, #tpu.memory_space<vmem>>, vector<12x3xbf16>
    %c0_20 = arith.constant 0 : index
    %c0_21 = arith.constant 0 : index
    %26 = vector.load %arg9[%c0_20, %c0_21] : memref<1x3xf32, #tpu.memory_space<vmem>>, vector<1x3xf32>
    %27 = arith.truncf %24 : vector<8x12xf32> to vector<8x12xbf16>
    %cst_22 = arith.constant dense<0.000000e+00> : vector<8x3xf32>
    %28 = tpu.matmul %27, %25, %cst_22 {dimension_numbers = #tpu.dot_dimension_numbers<[1], [0], [0], [1], [0, 0, 1, 1], [], []>} : vector<8x12xbf16>, vector<12x3xbf16>, vector<8x3xf32> -> vector<8x3xf32>
    %29 = vector.broadcast %26 : vector<1x3xf32> to vector<8x3xf32>
    %30 = arith.addf %28, %29 : vector<8x3xf32>
    %c0_23 = arith.constant 0 : index
    %c0_24 = arith.constant 0 : index
    %31 = vector.load %arg10[%c0_23, %c0_24] : memref<3x12xbf16, #tpu.memory_space<vmem>>, vector<3x12xbf16>
    %c0_25 = arith.constant 0 : index
    %c0_26 = arith.constant 0 : index
    %32 = vector.load %arg11[%c0_25, %c0_26] : memref<1x12xf32, #tpu.memory_space<vmem>>, vector<1x12xf32>
    %33 = arith.truncf %30 : vector<8x3xf32> to vector<8x3xbf16>
    %cst_27 = arith.constant dense<0.000000e+00> : vector<8x12xf32>
    %34 = tpu.matmul %33, %31, %cst_27 {dimension_numbers = #tpu.dot_dimension_numbers<[1], [0], [0], [1], [0, 0, 1, 1], [], []>} : vector<8x3xbf16>, vector<3x12xbf16>, vector<8x12xf32> -> vector<8x12xf32>
    %35 = vector.broadcast %32 : vector<1x12xf32> to vector<8x12xf32>
    %36 = arith.addf %34, %35 : vector<8x12xf32>
    %cst_28 = arith.constant 0.000000e+00 : f32
    %37 = vector.broadcast %cst_28 : f32 to vector<8x12xf32>
    %38 = arith.maximumf %36, %37 : vector<8x12xf32>
    %c0_29 = arith.constant 0 : index
    %c0_30 = arith.constant 0 : index
    %39 = vector.load %arg12[%c0_29, %c0_30] : memref<12x64xbf16, #tpu.memory_space<vmem>>, vector<12x64xbf16>
    %c0_31 = arith.constant 0 : index
    %c0_32 = arith.constant 0 : index
    %40 = vector.load %arg13[%c0_31, %c0_32] : memref<1x64xf32, #tpu.memory_space<vmem>>, vector<1x64xf32>
    %41 = arith.truncf %38 : vector<8x12xf32> to vector<8x12xbf16>
    %cst_33 = arith.constant dense<0.000000e+00> : vector<8x64xf32>
    %42 = tpu.matmul %41, %39, %cst_33 {dimension_numbers = #tpu.dot_dimension_numbers<[1], [0], [0], [1], [0, 0, 1, 1], [], []>} : vector<8x12xbf16>, vector<12x64xbf16>, vector<8x64xf32> -> vector<8x64xf32>
    %43 = vector.broadcast %40 : vector<1x64xf32> to vector<8x64xf32>
    %44 = arith.addf %42, %43 : vector<8x64xf32>
    %cst_34 = arith.constant 0.000000e+00 : f32
    %45 = vector.broadcast %cst_34 : f32 to vector<8x64xf32>
    %46 = arith.maximumf %44, %45 : vector<8x64xf32>
    %c0_35 = arith.constant 0 : index
    %c0_36 = arith.constant 0 : index
    %47 = vector.load %arg14[%c0_35, %c0_36] : memref<64x128xbf16, #tpu.memory_space<vmem>>, vector<64x128xbf16>
    %c0_37 = arith.constant 0 : index
    %c0_38 = arith.constant 0 : index
    %48 = vector.load %arg15[%c0_37, %c0_38] : memref<1x128xf32, #tpu.memory_space<vmem>>, vector<1x128xf32>
    %49 = arith.truncf %46 : vector<8x64xf32> to vector<8x64xbf16>
    %cst_39 = arith.constant dense<0.000000e+00> : vector<8x128xf32>
    %50 = tpu.matmul %49, %47, %cst_39 {dimension_numbers = #tpu.dot_dimension_numbers<[1], [0], [0], [1], [0, 0, 1, 1], [], []>} : vector<8x64xbf16>, vector<64x128xbf16>, vector<8x128xf32> -> vector<8x128xf32>
    %51 = vector.broadcast %48 : vector<1x128xf32> to vector<8x128xf32>
    %52 = arith.addf %50, %51 : vector<8x128xf32>
    %cst_40 = arith.constant 0.000000e+00 : f32
    %53 = vector.broadcast %cst_40 : f32 to vector<8x128xf32>
    %54 = arith.maximumf %52, %53 : vector<8x128xf32>
    %c0_41 = arith.constant 0 : index
    %c0_42 = arith.constant 0 : index
    %55 = vector.load %arg16[%c0_41, %c0_42] : memref<128x896xbf16, #tpu.memory_space<vmem>>, vector<128x896xbf16>
    %c0_43 = arith.constant 0 : index
    %c0_44 = arith.constant 0 : index
    %56 = vector.load %arg17[%c0_43, %c0_44] : memref<1x896xf32, #tpu.memory_space<vmem>>, vector<1x896xf32>
    %57 = arith.truncf %54 : vector<8x128xf32> to vector<8x128xbf16>
    %cst_45 = arith.constant dense<0.000000e+00> : vector<8x896xf32>
    %58 = tpu.matmul %57, %55, %cst_45 {dimension_numbers = #tpu.dot_dimension_numbers<[1], [0], [0], [1], [0, 0, 1, 1], [], []>} : vector<8x128xbf16>, vector<128x896xbf16>, vector<8x896xf32> -> vector<8x896xf32>
    %59 = vector.broadcast %56 : vector<1x896xf32> to vector<8x896xf32>
    %60 = arith.addf %58, %59 : vector<8x896xf32>
    %61 = math.tanh %60 : vector<8x896xf32>
    %c0_46 = arith.constant 0 : index
    %c0_47 = arith.constant 0 : index
    %62 = vector.load %arg18[%c0_46, %c0_47] : memref<8x896xf32, #tpu.memory_space<vmem>>, vector<8x896xf32>
    tpu.vector_store %arg18[%c0_46, %c0_47], %61 {strides = array<i32>} : memref<8x896xf32, #tpu.memory_space<vmem>>, vector<8x896xf32>,
    return
  }
  func.func @transform_0(%arg0: i32) -> (i32, i32) {
    %c0_i32 = arith.constant 0 : i32
    %c0_i32_0 = arith.constant 0 : i32
    return %arg0, %c0_i32 : i32, i32
  }
  func.func @transform_1(%arg0: i32) -> (i32, i32) {
    %c0_i32 = arith.constant 0 : i32
    %c0_i32_0 = arith.constant 0 : i32
    %c0_i32_1 = arith.constant 0 : i32
    return %c0_i32, %c0_i32_0 : i32, i32
  }
  func.func @transform_2(%arg0: i32) -> (i32, i32) {
    %c0_i32 = arith.constant 0 : i32
    %c0_i32_0 = arith.constant 0 : i32
    %c0_i32_1 = arith.constant 0 : i32
    return %c0_i32, %c0_i32_0 : i32, i32
  }
  func.func @transform_3(%arg0: i32) -> (i32, i32) {
    %c0_i32 = arith.constant 0 : i32
    %c0_i32_0 = arith.constant 0 : i32
    %c0_i32_1 = arith.constant 0 : i32
    return %c0_i32, %c0_i32_0 : i32, i32
  }
  func.func @transform_4(%arg0: i32) -> (i32, i32) {
    %c0_i32 = arith.constant 0 : i32
    %c0_i32_0 = arith.constant 0 : i32
    %c0_i32_1 = arith.constant 0 : i32
    return %c0_i32, %c0_i32_0 : i32, i32
  }
  func.func @transform_5(%arg0: i32) -> (i32, i32) {
    %c0_i32 = arith.constant 0 : i32
    %c0_i32_0 = arith.constant 0 : i32
    %c0_i32_1 = arith.constant 0 : i32
    return %c0_i32, %c0_i32_0 : i32, i32
  }
  func.func @transform_6(%arg0: i32) -> (i32, i32) {
    %c0_i32 = arith.constant 0 : i32
    %c0_i32_0 = arith.constant 0 : i32
    %c0_i32_1 = arith.constant 0 : i32
    return %c0_i32, %c0_i32_0 : i32, i32
  }
  func.func @transform_7(%arg0: i32) -> (i32, i32) {
    %c0_i32 = arith.constant 0 : i32
    %c0_i32_0 = arith.constant 0 : i32
    %c0_i32_1 = arith.constant 0 : i32
    return %c0_i32, %c0_i32_0 : i32, i32
  }
  func.func @transform_8(%arg0: i32) -> (i32, i32) {
    %c0_i32 = arith.constant 0 : i32
    %c0_i32_0 = arith.constant 0 : i32
    %c0_i32_1 = arith.constant 0 : i32
    return %c0_i32, %c0_i32_0 : i32, i32
  }
  func.func @transform_9(%arg0: i32) -> (i32, i32) {
    %c0_i32 = arith.constant 0 : i32
    %c0_i32_0 = arith.constant 0 : i32
    %c0_i32_1 = arith.constant 0 : i32
    return %c0_i32, %c0_i32_0 : i32, i32
  }
  func.func @transform_10(%arg0: i32) -> (i32, i32) {
    %c0_i32 = arith.constant 0 : i32
    %c0_i32_0 = arith.constant 0 : i32
    %c0_i32_1 = arith.constant 0 : i32
    return %c0_i32, %c0_i32_0 : i32, i32
  }
  func.func @transform_11(%arg0: i32) -> (i32, i32) {
    %c0_i32 = arith.constant 0 : i32
    %c0_i32_0 = arith.constant 0 : i32
    %c0_i32_1 = arith.constant 0 : i32
    return %c0_i32, %c0_i32_0 : i32, i32
  }
  func.func @transform_12(%arg0: i32) -> (i32, i32) {
    %c0_i32 = arith.constant 0 : i32
    %c0_i32_0 = arith.constant 0 : i32
    %c0_i32_1 = arith.constant 0 : i32
    return %c0_i32, %c0_i32_0 : i32, i32
  }
  func.func @transform_13(%arg0: i32) -> (i32, i32) {
    %c0_i32 = arith.constant 0 : i32
    %c0_i32_0 = arith.constant 0 : i32
    %c0_i32_1 = arith.constant 0 : i32
    return %c0_i32, %c0_i32_0 : i32, i32
  }
  func.func @transform_14(%arg0: i32) -> (i32, i32) {
    %c0_i32 = arith.constant 0 : i32
    %c0_i32_0 = arith.constant 0 : i32
    %c0_i32_1 = arith.constant 0 : i32
    return %c0_i32, %c0_i32_0 : i32, i32
  }
  func.func @transform_15(%arg0: i32) -> (i32, i32) {
    %c0_i32 = arith.constant 0 : i32
    %c0_i32_0 = arith.constant 0 : i32
    %c0_i32_1 = arith.constant 0 : i32
    return %c0_i32, %c0_i32_0 : i32, i32
  }
  func.func @transform_16(%arg0: i32) -> (i32, i32) {
    %c0_i32 = arith.constant 0 : i32
    %c0_i32_0 = arith.constant 0 : i32
    %c0_i32_1 = arith.constant 0 : i32
    return %c0_i32, %c0_i32_0 : i32, i32
  }
  func.func @transform_17(%arg0: i32) -> (i32, i32) {
    %c0_i32 = arith.constant 0 : i32
    %c0_i32_0 = arith.constant 0 : i32
    return %arg0, %c0_i32 : i32, i32
  }
}

</mosaic_0001>

<llo_original>
// kernel: tpu_custom_call.1
$region0: #{tpu_custom_call.1}
  #allocation0 [shape = 'u32[]', space=smem, size = 0x4, offset = 0x4, fixed_abs, tag = 'smem constant byte address 0x4 - core index']
  #allocation1 [shape = 'u32[72,128]{1,0:T(1,128)}', space=vmem, size = 0x9000, scoped, tag = 'internal scratch']
  %s0 = inlined_call_operand.vmem [shape: f32[8,896], index: 0, kind: input, shape index: {}]
  %s1 = inlined_call_operand.hbm [shape: bf16[896,128], index: 1, kind: input, shape index: {}]
  %s2 = inlined_call_operand.vmem [shape: f32[1,128], index: 2, kind: input, shape index: {}]
  %s3 = inlined_call_operand.vmem [shape: bf16[128,64], index: 3, kind: input, shape index: {}]
  %s4 = inlined_call_operand.vmem [shape: f32[1,64], index: 4, kind: input, shape index: {}]
  %s5 = inlined_call_operand.vmem [shape: bf16[64,12], index: 5, kind: input, shape index: {}]
  %s6 = inlined_call_operand.vmem [shape: f32[1,12], index: 6, kind: input, shape index: {}]
  %s7 = inlined_call_operand.vmem [shape: bf16[12,3], index: 7, kind: input, shape index: {}]
  %s8 = inlined_call_operand.vmem [shape: f32[1,3], index: 8, kind: input, shape index: {}]
  %s9 = inlined_call_operand.vmem [shape: bf16[3,12], index: 9, kind: input, shape index: {}]
  %s10 = inlined_call_operand.vmem [shape: f32[1,12], index: 10, kind: input, shape index: {}]
  %s11 = inlined_call_operand.vmem [shape: bf16[12,64], index: 11, kind: input, shape index: {}]
  %s12 = inlined_call_operand.vmem [shape: f32[1,64], index: 12, kind: input, shape index: {}]
  %s13 = inlined_call_operand.vmem [shape: bf16[64,128], index: 13, kind: input, shape index: {}]
  %s14 = inlined_call_operand.vmem [shape: f32[1,128], index: 14, kind: input, shape index: {}]
  %s15 = inlined_call_operand.hbm [shape: bf16[128,896], index: 15, kind: input, shape index: {}]
  %s16 = inlined_call_operand.vmem [shape: f32[1,896], index: 16, kind: input, shape index: {}]
  %s17 = inlined_call_operand.hbm [shape: f32[8,896], index: 17, kind: output, shape index: {}]
  %s18 = sld [smem:[#allocation0]]
  $region86: #{tpu_custom_call.1} parent=0
    _
  %s20 = ssub.s32 1, %s18
  %s21 = scalar_select 0, %s20, %s18
  $region1: #{tpu_custom_call.1} parent=0
    #allocation2 [shape = 'u8[229376]{0}', space=vmem, size = 0x38000, scoped, tag = 'input window, operand 1, single buffered']
    #allocation3 [shape = 's32[1]{0}', space=sflag, size = 0x4, scoped, tag = 'scoped memory for tpu_custom_call.1']
    #allocation4 [shape = 's32[1]{0}', space=sflag, size = 0x4, scoped, tag = 'scoped memory for tpu_custom_call.1']
    #allocation5 [shape = 'u8[229376]{0}', space=vmem, size = 0x38000, scoped, tag = 'input window, operand 15, single buffered']
    #allocation6 [shape = 's32[1]{0}', space=sflag, size = 0x4, scoped, tag = 'scoped memory for tpu_custom_call.1']
    #allocation7 [shape = 'u8[28672]{0}', space=vmem, size = 0x7000, scoped, tag = 'output window, operand 0, single buffered']
    %22 = vsyncpa [#allocation3], 0
    %23 = vsyncpa [#allocation6], 0
    %24 = vsyncpa [#allocation4], 0
    // Predicated region
    $region2: #{tpu_custom_call.1} parent=1 // pred_check
      _
    $region3: #{tpu_custom_call.1} parent=1 // pred_check_branch
      %26 = sbr.rel (0) target = $region5
    $region4: #{tpu_custom_call.1} parent=1 // pred_region
      _
    $region5: #{tpu_custom_call.1} parent=1 // pred_fallthru
      _
    // Predicated region
    $region6: #{tpu_custom_call.1} parent=1 // pred_check
      _
    $region7: #{tpu_custom_call.1} parent=1 // pred_check_branch
      %28 = sbr.rel (0) target = $region9
    $region8: #{tpu_custom_call.1} parent=1 // pred_region
      %30 = vsyncadd [#allocation3], 0
      %s31 = sshll.u32 %s1, 4
      %s32 = int_to_ptr.hbm [resolvable:$true] %s31
      %s33 = sshll.u32 [#allocation2], 4
      %s34 = int_to_ptr.vmem [resolvable:$true] %s33
      %39 = dma.hbm_to_vmem [thread:$0]  %s32, 7168, %s34, [#allocation3], 64, 64, 4
    $region9: #{tpu_custom_call.1} parent=1 // pred_fallthru
      _
    // Predicated region
    $region10: #{tpu_custom_call.1} parent=1 // pred_check
      _
    $region11: #{tpu_custom_call.1} parent=1 // pred_check_branch
      %41 = sbr.rel (0) target = $region13
    $region12: #{tpu_custom_call.1} parent=1 // pred_region
      _
    $region13: #{tpu_custom_call.1} parent=1 // pred_fallthru
      _
    // Predicated region
    $region14: #{tpu_custom_call.1} parent=1 // pred_check
      _
    $region15: #{tpu_custom_call.1} parent=1 // pred_check_branch
      %43 = sbr.rel (0) target = $region17
    $region16: #{tpu_custom_call.1} parent=1 // pred_region
      _
    $region17: #{tpu_custom_call.1} parent=1 // pred_fallthru
      _
    // Predicated region
    $region18: #{tpu_custom_call.1} parent=1 // pred_check
      _
    $region19: #{tpu_custom_call.1} parent=1 // pred_check_branch
      %45 = sbr.rel (0) target = $region21
    $region20: #{tpu_custom_call.1} parent=1 // pred_region
      _
    $region21: #{tpu_custom_call.1} parent=1 // pred_fallthru
      _
    // Predicated region
    $region22: #{tpu_custom_call.1} parent=1 // pred_check
      _
    $region23: #{tpu_custom_call.1} parent=1 // pred_check_branch
      %47 = sbr.rel (0) target = $region25
    $region24: #{tpu_custom_call.1} parent=1 // pred_region
      _
    $region25: #{tpu_custom_call.1} parent=1 // pred_fallthru
      _
    // Predicated region
    $region26: #{tpu_custom_call.1} parent=1 // pred_check
      _
    $region27: #{tpu_custom_call.1} parent=1 // pred_check_branch
      %49 = sbr.rel (0) target = $region29
    $region28: #{tpu_custom_call.1} parent=1 // pred_region
      _
    $region29: #{tpu_custom_call.1} parent=1 // pred_fallthru
      _
    // Predicated region
    $region30: #{tpu_custom_call.1} parent=1 // pred_check
      _
    $region31: #{tpu_custom_call.1} parent=1 // pred_check_branch
      %51 = sbr.rel (0) target = $region33
    $region32: #{tpu_custom_call.1} parent=1 // pred_region
      _
    $region33: #{tpu_custom_call.1} parent=1 // pred_fallthru
      _
    // Predicated region
    $region34: #{tpu_custom_call.1} parent=1 // pred_check
      _
    $region35: #{tpu_custom_call.1} parent=1 // pred_check_branch
      %53 = sbr.rel (0) target = $region37
    $region36: #{tpu_custom_call.1} parent=1 // pred_region
      _
    $region37: #{tpu_custom_call.1} parent=1 // pred_fallthru
      _
    // Predicated region
    $region38: #{tpu_custom_call.1} parent=1 // pred_check
      _
    $region39: #{tpu_custom_call.1} parent=1 // pred_check_branch
      %55 = sbr.rel (0) target = $region41
    $region40: #{tpu_custom_call.1} parent=1 // pred_region
      _
    $region41: #{tpu_custom_call.1} parent=1 // pred_fallthru
      _
    // Predicated region
    $region42: #{tpu_custom_call.1} parent=1 // pred_check
      _
    $region43: #{tpu_custom_call.1} parent=1 // pred_check_branch
      %57 = sbr.rel (0) target = $region45
    $region44: #{tpu_custom_call.1} parent=1 // pred_region
      _
    $region45: #{tpu_custom_call.1} parent=1 // pred_fallthru
      _
    // Predicated region
    $region46: #{tpu_custom_call.1} parent=1 // pred_check
      _
    $region47: #{tpu_custom_call.1} parent=1 // pred_check_branch
      %59 = sbr.rel (0) target = $region49
    $region48: #{tpu_custom_call.1} parent=1 // pred_region
      _
    $region49: #{tpu_custom_call.1} parent=1 // pred_fallthru
      _
    // Predicated region
    $region50: #{tpu_custom_call.1} parent=1 // pred_check
      _
    $region51: #{tpu_custom_call.1} parent=1 // pred_check_branch
      %61 = sbr.rel (0) target = $region53
    $region52: #{tpu_custom_call.1} parent=1 // pred_region
      _
    $region53: #{tpu_custom_call.1} parent=1 // pred_fallthru
      _
    // Predicated region
    $region54: #{tpu_custom_call.1} parent=1 // pred_check
      _
    $region55: #{tpu_custom_call.1} parent=1 // pred_check_branch
      %63 = sbr.rel (0) target = $region57
    $region56: #{tpu_custom_call.1} parent=1 // pred_region
      _
    $region57: #{tpu_custom_call.1} parent=1 // pred_fallthru
      _
    // Predicated region
    $region58: #{tpu_custom_call.1} parent=1 // pred_check
      _
    $region59: #{tpu_custom_call.1} parent=1 // pred_check_branch
      %65 = sbr.rel (0) target = $region61
    $region60: #{tpu_custom_call.1} parent=1 // pred_region
      _
    $region61: #{tpu_custom_call.1} parent=1 // pred_fallthru
      _
    // Predicated region
    $region62: #{tpu_custom_call.1} parent=1 // pred_check
      _
    $region63: #{tpu_custom_call.1} parent=1 // pred_check_branch
      %67 = sbr.rel (0) target = $region65
    $region64: #{tpu_custom_call.1} parent=1 // pred_region
      %69 = vsyncadd [#allocation6], 0
      %s70 = sshll.u32 %s15, 4
      %s71 = int_to_ptr.hbm [resolvable:$true] %s70
      %s72 = sshll.u32 [#allocation5], 4
      %s73 = int_to_ptr.vmem [resolvable:$true] %s72
      %78 = dma.hbm_to_vmem [thread:$0]  %s71, 7168, %s73, [#allocation6], 448, 448, 28
    $region65: #{tpu_custom_call.1} parent=1 // pred_fallthru
      _
    // Predicated region
    $region66: #{tpu_custom_call.1} parent=1 // pred_check
      _
    $region67: #{tpu_custom_call.1} parent=1 // pred_check_branch
      %80 = sbr.rel (0) target = $region69
    $region68: #{tpu_custom_call.1} parent=1 // pred_region
      _
    $region69: #{tpu_custom_call.1} parent=1 // pred_fallthru
      _
    // Predicated region
    $region70: #{tpu_custom_call.1} parent=1 // pred_check
      _
    $region71: #{tpu_custom_call.1} parent=1 // pred_check_branch
      %82 = sbr.rel (0) target = $region73
    $region72: #{tpu_custom_call.1} parent=1 // pred_region
      %84 = dma.done [#allocation3], 7168
    $region73: #{tpu_custom_call.1} parent=1 // pred_fallthru
      _
    // Predicated region
    $region74: #{tpu_custom_call.1} parent=1 // pred_check
      _
    $region75: #{tpu_custom_call.1} parent=1 // pred_check_branch
      %86 = sbr.rel (0) target = $region77
    $region76: #{tpu_custom_call.1} parent=1 // pred_region
      %88 = dma.done [#allocation6], 7168
    $region77: #{tpu_custom_call.1} parent=1 // pred_fallthru
      _
    %v90 = vld [vmem:[%s0] sm:$0xff]
    %v91 = vld [vmem:[%s0 + $0x8] sm:$0xff]
    %v92 = vld [vmem:[%s0 + $0x10] sm:$0xff]
    %v93 = vld [vmem:[%s0 + $0x18] sm:$0xff]
    %v94 = vld [vmem:[%s0 + $0x20] sm:$0xff]
    %v95 = vld [vmem:[%s0 + $0x28] sm:$0xff]
    %v96 = vld [vmem:[%s0 + $0x30] sm:$0xff]
    %v97 = vld [vmem:[#allocation2] sm:$0xf]
    %v98 = vld [vmem:[#allocation2 + $0x4] sm:$0xf]
    %v99 = vld [vmem:[#allocation2 + $0x8] sm:$0xf]
    %v100 = vld [vmem:[#allocation2 + $0xc] sm:$0xf]
    %v101 = vld [vmem:[#allocation2 + $0x10] sm:$0xf]
    %v102 = vld [vmem:[#allocation2 + $0x14] sm:$0xf]
    %v103 = vld [vmem:[#allocation2 + $0x18] sm:$0xf]
    %v104 = vld [vmem:[#allocation2 + $0x1c] sm:$0xf]
    %v105 = vld [vmem:[#allocation2 + $0x20] sm:$0xf]
    %v106 = vld [vmem:[#allocation2 + $0x24] sm:$0xf]
    %v107 = vld [vmem:[#allocation2 + $0x28] sm:$0xf]
    %v108 = vld [vmem:[#allocation2 + $0x2c] sm:$0xf]
    %v109 = vld [vmem:[#allocation2 + $0x30] sm:$0xf]
    %v110 = vld [vmem:[#allocation2 + $0x34] sm:$0xf]
    %v111 = vld [vmem:[#allocation2 + $0x38] sm:$0xf]
    %v112 = vld [vmem:[#allocation2 + $0x3c] sm:$0xf]
    %v113 = vld [vmem:[#allocation2 + $0x40] sm:$0xf]
    %v114 = vld [vmem:[#allocation2 + $0x44] sm:$0xf]
    %v115 = vld [vmem:[#allocation2 + $0x48] sm:$0xf]
    %v116 = vld [vmem:[#allocation2 + $0x4c] sm:$0xf]
    %v117 = vld [vmem:[#allocation2 + $0x50] sm:$0xf]
    %v118 = vld [vmem:[#allocation2 + $0x54] sm:$0xf]
    %v119 = vld [vmem:[#allocation2 + $0x58] sm:$0xf]
    %v120 = vld [vmem:[#allocation2 + $0x5c] sm:$0xf]
    %v121 = vld [vmem:[#allocation2 + $0x60] sm:$0xf]
    %v122 = vld [vmem:[#allocation2 + $0x64] sm:$0xf]
    %v123 = vld [vmem:[#allocation2 + $0x68] sm:$0xf]
    %v124 = vld [vmem:[#allocation2 + $0x6c] sm:$0xf]
    %v125 = vld [vmem:[#allocation2 + $0x70] sm:$0xf]
    %v126 = vld [vmem:[#allocation2 + $0x74] sm:$0xf]
    %v127 = vld [vmem:[#allocation2 + $0x78] sm:$0xf]
    %v128 = vld [vmem:[#allocation2 + $0x7c] sm:$0xf]
    %v129 = vld [vmem:[#allocation2 + $0x80] sm:$0xf]
    %v130 = vld [vmem:[#allocation2 + $0x84] sm:$0xf]
    %v131 = vld [vmem:[#allocation2 + $0x88] sm:$0xf]
    %v132 = vld [vmem:[#allocation2 + $0x8c] sm:$0xf]
    %v133 = vld [vmem:[#allocation2 + $0x90] sm:$0xf]
    %v134 = vld [vmem:[#allocation2 + $0x94] sm:$0xf]
    %v135 = vld [vmem:[#allocation2 + $0x98] sm:$0xf]
    %v136 = vld [vmem:[#allocation2 + $0x9c] sm:$0xf]
    %v137 = vld [vmem:[#allocation2 + $0xa0] sm:$0xf]
    %v138 = vld [vmem:[#allocation2 + $0xa4] sm:$0xf]
    %v139 = vld [vmem:[#allocation2 + $0xa8] sm:$0xf]
    %v140 = vld [vmem:[#allocation2 + $0xac] sm:$0xf]
    %v141 = vld [vmem:[#allocation2 + $0xb0] sm:$0xf]
    %v142 = vld [vmem:[#allocation2 + $0xb4] sm:$0xf]
    %v143 = vld [vmem:[#allocation2 + $0xb8] sm:$0xf]
    %v144 = vld [vmem:[#allocation2 + $0xbc] sm:$0xf]
    %v145 = vld [vmem:[#allocation2 + $0xc0] sm:$0xf]
    %v146 = vld [vmem:[#allocation2 + $0xc4] sm:$0xf]
    %v147 = vld [vmem:[#allocation2 + $0xc8] sm:$0xf]
    %v148 = vld [vmem:[#allocation2 + $0xcc] sm:$0xf]
    %v149 = vld [vmem:[#allocation2 + $0xd0] sm:$0xf]
    %v150 = vld [vmem:[#allocation2 + $0xd4] sm:$0xf]
    %v151 = vld [vmem:[#allocation2 + $0xd8] sm:$0xf]
    %v152 = vld [vmem:[#allocation2 + $0xdc] sm:$0xf]
    %v153 = vld [vmem:[#allocation2 + $0xe0] sm:$0xf]
    %v154 = vld [vmem:[#allocation2 + $0xe4] sm:$0xf]
    %v155 = vld [vmem:[#allocation2 + $0xe8] sm:$0xf]
    %v156 = vld [vmem:[#allocation2 + $0xec] sm:$0xf]
    %v157 = vld [vmem:[#allocation2 + $0xf0] sm:$0xf]
    %v158 = vld [vmem:[#allocation2 + $0xf4] sm:$0xf]
    %v159 = vld [vmem:[#allocation2 + $0xf8] sm:$0xf]
    %v160 = vld [vmem:[#allocation2 + $0xfc] sm:$0xf]
    %v161 = vld [vmem:[#allocation2 + $0x100] sm:$0xf]
    %v162 = vld [vmem:[#allocation2 + $0x104] sm:$0xf]
    %v163 = vld [vmem:[#allocation2 + $0x108] sm:$0xf]
    %v164 = vld [vmem:[#allocation2 + $0x10c] sm:$0xf]
    %v165 = vld [vmem:[#allocation2 + $0x110] sm:$0xf]
    %v166 = vld [vmem:[#allocation2 + $0x114] sm:$0xf]
    %v167 = vld [vmem:[#allocation2 + $0x118] sm:$0xf]
    %v168 = vld [vmem:[#allocation2 + $0x11c] sm:$0xf]
    %v169 = vld [vmem:[#allocation2 + $0x120] sm:$0xf]
    %v170 = vld [vmem:[#allocation2 + $0x124] sm:$0xf]
    %v171 = vld [vmem:[#allocation2 + $0x128] sm:$0xf]
    %v172 = vld [vmem:[#allocation2 + $0x12c] sm:$0xf]
    %v173 = vld [vmem:[#allocation2 + $0x130] sm:$0xf]
    %v174 = vld [vmem:[#allocation2 + $0x134] sm:$0xf]
    %v175 = vld [vmem:[#allocation2 + $0x138] sm:$0xf]
    %v176 = vld [vmem:[#allocation2 + $0x13c] sm:$0xf]
    %v177 = vld [vmem:[#allocation2 + $0x140] sm:$0xf]
    %v178 = vld [vmem:[#allocation2 + $0x144] sm:$0xf]
    %v179 = vld [vmem:[#allocation2 + $0x148] sm:$0xf]
    %v180 = vld [vmem:[#allocation2 + $0x14c] sm:$0xf]
    %v181 = vld [vmem:[#allocation2 + $0x150] sm:$0xf]
    %v182 = vld [vmem:[#allocation2 + $0x154] sm:$0xf]
    %v183 = vld [vmem:[#allocation2 + $0x158] sm:$0xf]
    %v184 = vld [vmem:[#allocation2 + $0x15c] sm:$0xf]
    %v185 = vld [vmem:[#allocation2 + $0x160] sm:$0xf]
    %v186 = vld [vmem:[#allocation2 + $0x164] sm:$0xf]
    %v187 = vld [vmem:[#allocation2 + $0x168] sm:$0xf]
    %v188 = vld [vmem:[#allocation2 + $0x16c] sm:$0xf]
    %v189 = vld [vmem:[#allocation2 + $0x170] sm:$0xf]
    %v190 = vld [vmem:[#allocation2 + $0x174] sm:$0xf]
    %v191 = vld [vmem:[#allocation2 + $0x178] sm:$0xf]
    %v192 = vld [vmem:[#allocation2 + $0x17c] sm:$0xf]
    %v193 = vld [vmem:[#allocation2 + $0x180] sm:$0xf]
    %v194 = vld [vmem:[#allocation2 + $0x184] sm:$0xf]
    %v195 = vld [vmem:[#allocation2 + $0x188] sm:$0xf]
    %v196 = vld [vmem:[#allocation2 + $0x18c] sm:$0xf]
    %v197 = vld [vmem:[#allocation2 + $0x190] sm:$0xf]
    %v198 = vld [vmem:[#allocation2 + $0x194] sm:$0xf]
    %v199 = vld [vmem:[#allocation2 + $0x198] sm:$0xf]
    %v200 = vld [vmem:[#allocation2 + $0x19c] sm:$0xf]
    %v201 = vld [vmem:[#allocation2 + $0x1a0] sm:$0xf]
    %v202 = vld [vmem:[#allocation2 + $0x1a4] sm:$0xf]
    %v203 = vld [vmem:[#allocation2 + $0x1a8] sm:$0xf]
    %v204 = vld [vmem:[#allocation2 + $0x1ac] sm:$0xf]
    %v205 = vld [vmem:[#allocation2 + $0x1b0] sm:$0xf]
    %v206 = vld [vmem:[#allocation2 + $0x1b4] sm:$0xf]
    %v207 = vld [vmem:[#allocation2 + $0x1b8] sm:$0xf]
    %v208 = vld [vmem:[#allocation2 + $0x1bc] sm:$0xf]
    %v209 = vld [vmem:[%s2] sm:$0x1]
    %v210 = vpack.c.bf16 %v90, %v90
    %v211 = vpack.c.bf16 %v91, %v91
    %v212 = vpack.c.bf16 %v92, %v92
    %v213 = vpack.c.bf16 %v93, %v93
    %v214 = vpack.c.bf16 %v94, %v94
    %v215 = vpack.c.bf16 %v95, %v95
    %v216 = vpack.c.bf16 %v96, %v96
    %v218 = vperm.slane %v209, 0
    %v332 = vunpack.c.l.b16 %v97
    %v333 = vunpack.c.l.b16 %v98
    %v334 = vunpack.c.l.b16 %v99
    %v335 = vunpack.c.l.b16 %v100
    %v336 = vunpack.c.l.b16 %v101
    %v337 = vunpack.c.l.b16 %v102
    %v338 = vunpack.c.l.b16 %v103
    %v339 = vunpack.c.l.b16 %v104
    %v340 = vunpack.c.l.b16 %v105
    %v341 = vunpack.c.l.b16 %v106
    %v342 = vunpack.c.l.b16 %v107
    %v343 = vunpack.c.l.b16 %v108
    %v344 = vunpack.c.l.b16 %v109
    %v345 = vunpack.c.l.b16 %v110
    %v346 = vunpack.c.l.b16 %v111
    %v347 = vunpack.c.l.b16 %v112
    %v348 = vunpack.c.l.b16 %v113
    %v349 = vunpack.c.l.b16 %v114
    %v350 = vunpack.c.l.b16 %v115
    %v351 = vunpack.c.l.b16 %v116
    %v352 = vunpack.c.l.b16 %v117
    %v353 = vunpack.c.l.b16 %v118
    %v354 = vunpack.c.l.b16 %v119
    %v355 = vunpack.c.l.b16 %v120
    %v356 = vunpack.c.l.b16 %v121
    %v357 = vunpack.c.l.b16 %v122
    %v358 = vunpack.c.l.b16 %v123
    %v359 = vunpack.c.l.b16 %v124
    %v360 = vunpack.c.l.b16 %v125
    %v361 = vunpack.c.l.b16 %v126
    %v362 = vunpack.c.l.b16 %v127
    %v363 = vunpack.c.l.b16 %v128
    %v364 = vunpack.c.l.b16 %v129
    %v365 = vunpack.c.l.b16 %v130
    %v366 = vunpack.c.l.b16 %v131
    %v367 = vunpack.c.l.b16 %v132
    %v368 = vunpack.c.l.b16 %v133
    %v369 = vunpack.c.l.b16 %v134
    %v370 = vunpack.c.l.b16 %v135
    %v371 = vunpack.c.l.b16 %v136
    %v372 = vunpack.c.l.b16 %v137
    %v373 = vunpack.c.l.b16 %v138
    %v374 = vunpack.c.l.b16 %v139
    %v375 = vunpack.c.l.b16 %v140
    %v376 = vunpack.c.l.b16 %v141
    %v377 = vunpack.c.l.b16 %v142
    %v378 = vunpack.c.l.b16 %v143
    %v379 = vunpack.c.l.b16 %v144
    %v380 = vunpack.c.l.b16 %v145
    %v381 = vunpack.c.l.b16 %v146
    %v382 = vunpack.c.l.b16 %v147
    %v383 = vunpack.c.l.b16 %v148
    %v384 = vunpack.c.l.b16 %v149
    %v385 = vunpack.c.l.b16 %v150
    %v386 = vunpack.c.l.b16 %v151
    %v387 = vunpack.c.l.b16 %v152
    %v388 = vunpack.c.l.b16 %v153
    %v389 = vunpack.c.l.b16 %v154
    %v390 = vunpack.c.l.b16 %v155
    %v391 = vunpack.c.l.b16 %v156
    %v392 = vunpack.c.l.b16 %v157
    %v393 = vunpack.c.l.b16 %v158
    %v394 = vunpack.c.l.b16 %v159
    %v395 = vunpack.c.l.b16 %v160
    %v396 = vunpack.c.l.b16 %v161
    %v397 = vunpack.c.l.b16 %v162
    %v398 = vunpack.c.l.b16 %v163
    %v399 = vunpack.c.l.b16 %v164
    %v400 = vunpack.c.l.b16 %v165
    %v401 = vunpack.c.l.b16 %v166
    %v402 = vunpack.c.l.b16 %v167
    %v403 = vunpack.c.l.b16 %v168
    %v404 = vunpack.c.l.b16 %v169
    %v405 = vunpack.c.l.b16 %v170
    %v406 = vunpack.c.l.b16 %v171
    %v407 = vunpack.c.l.b16 %v172
    %v408 = vunpack.c.l.b16 %v173
    %v409 = vunpack.c.l.b16 %v174
    %v410 = vunpack.c.l.b16 %v175
    %v411 = vunpack.c.l.b16 %v176
    %v412 = vunpack.c.l.b16 %v177
    %v413 = vunpack.c.l.b16 %v178
    %v414 = vunpack.c.l.b16 %v179
    %v415 = vunpack.c.l.b16 %v180
    %v416 = vunpack.c.l.b16 %v181
    %v417 = vunpack.c.l.b16 %v182
    %v418 = vunpack.c.l.b16 %v183
    %v419 = vunpack.c.l.b16 %v184
    %v420 = vunpack.c.l.b16 %v185
    %v421 = vunpack.c.l.b16 %v186
    %v422 = vunpack.c.l.b16 %v187
    %v423 = vunpack.c.l.b16 %v188
    %v424 = vunpack.c.l.b16 %v189
    %v425 = vunpack.c.l.b16 %v190
    %v426 = vunpack.c.l.b16 %v191
    %v427 = vunpack.c.l.b16 %v192
    %v428 = vunpack.c.l.b16 %v193
    %v429 = vunpack.c.l.b16 %v194
    %v430 = vunpack.c.l.b16 %v195
    %v431 = vunpack.c.l.b16 %v196
    %v432 = vunpack.c.l.b16 %v197
    %v433 = vunpack.c.l.b16 %v198
    %v434 = vunpack.c.l.b16 %v199
    %v435 = vunpack.c.l.b16 %v200
    %v436 = vunpack.c.l.b16 %v201
    %v437 = vunpack.c.l.b16 %v202
    %v438 = vunpack.c.l.b16 %v203
    %v439 = vunpack.c.l.b16 %v204
    %v440 = vunpack.c.l.b16 %v205
    %v441 = vunpack.c.l.b16 %v206
    %v442 = vunpack.c.l.b16 %v207
    %v443 = vunpack.c.l.b16 %v208
    %v444 = vpack.c.b16 %v333, %v332
    %v445 = vpack.c.b16 %v335, %v334
    %v446 = vpack.c.b16 %v337, %v336
    %v447 = vpack.c.b16 %v339, %v338
    %v448 = vpack.c.b16 %v341, %v340
    %v449 = vpack.c.b16 %v343, %v342
    %v450 = vpack.c.b16 %v345, %v344
    %v451 = vpack.c.b16 %v347, %v346
    %v452 = vpack.c.b16 %v349, %v348
    %v453 = vpack.c.b16 %v351, %v350
    %v454 = vpack.c.b16 %v353, %v352
    %v455 = vpack.c.b16 %v355, %v354
    %v456 = vpack.c.b16 %v357, %v356
    %v457 = vpack.c.b16 %v359, %v358
    %v458 = vpack.c.b16 %v361, %v360
    %v459 = vpack.c.b16 %v363, %v362
    %v460 = vpack.c.b16 %v365, %v364
    %v461 = vpack.c.b16 %v367, %v366
    %v462 = vpack.c.b16 %v369, %v368
    %v463 = vpack.c.b16 %v371, %v370
    %v464 = vpack.c.b16 %v373, %v372
    %v465 = vpack.c.b16 %v375, %v374
    %v466 = vpack.c.b16 %v377, %v376
    %v467 = vpack.c.b16 %v379, %v378
    %v468 = vpack.c.b16 %v381, %v380
    %v469 = vpack.c.b16 %v383, %v382
    %v470 = vpack.c.b16 %v385, %v384
    %v471 = vpack.c.b16 %v387, %v386
    %v472 = vpack.c.b16 %v389, %v388
    %v473 = vpack.c.b16 %v391, %v390
    %v474 = vpack.c.b16 %v393, %v392
    %v475 = vpack.c.b16 %v395, %v394
    %v476 = vpack.c.b16 %v397, %v396
    %v477 = vpack.c.b16 %v399, %v398
    %v478 = vpack.c.b16 %v401, %v400
    %v479 = vpack.c.b16 %v403, %v402
    %v480 = vpack.c.b16 %v405, %v404
    %v481 = vpack.c.b16 %v407, %v406
    %v482 = vpack.c.b16 %v409, %v408
    %v483 = vpack.c.b16 %v411, %v410
    %v484 = vpack.c.b16 %v413, %v412
    %v485 = vpack.c.b16 %v415, %v414
    %v486 = vpack.c.b16 %v417, %v416
    %v487 = vpack.c.b16 %v419, %v418
    %v488 = vpack.c.b16 %v421, %v420
    %v489 = vpack.c.b16 %v423, %v422
    %v490 = vpack.c.b16 %v425, %v424
    %v491 = vpack.c.b16 %v427, %v426
    %v492 = vpack.c.b16 %v429, %v428
    %v493 = vpack.c.b16 %v431, %v430
    %v494 = vpack.c.b16 %v433, %v432
    %v495 = vpack.c.b16 %v435, %v434
    %v496 = vpack.c.b16 %v437, %v436
    %v497 = vpack.c.b16 %v439, %v438
    %v498 = vpack.c.b16 %v441, %v440
    %v499 = vpack.c.b16 %v443, %v442
    %556 = vmatpush.bf16.msra.mxu0 %v451
    %557 = vmatpush.bf16.msra.mxu0 %v450
    %558 = vmatpush.bf16.msra.mxu0 %v449
    %559 = vmatpush.bf16.msra.mxu0 %v448
    %560 = vmatpush.bf16.msra.mxu0 %v447
    %561 = vmatpush.bf16.msra.mxu0 %v446
    %562 = vmatpush.bf16.msra.mxu0 %v445
    %563 = vmatpush.bf16.msra.mxu0 %v444
    %564 = vmatmul.bf16.gmra.mxu0 %v210
    %v565 = vpop.f32.mrf.mxu0
    %v566 = vadd.f32 %v218, %v565
    %v567 = vpop.f32.mrf.mxu0
    %568 = vdwg.mxu0
    %569 = vmatpush.bf16.msra.mxu0 %v459
    %570 = vmatpush.bf16.msra.mxu0 %v458
    %571 = vmatpush.bf16.msra.mxu0 %v457
    %572 = vmatpush.bf16.msra.mxu0 %v456
    %573 = vmatpush.bf16.msra.mxu0 %v455
    %574 = vmatpush.bf16.msra.mxu0 %v454
    %575 = vmatpush.bf16.msra.mxu0 %v453
    %576 = vmatpush.bf16.msra.mxu0 %v452
    %577 = vmatmul.bf16.gmra.mxu0 %v211
    %v578 = vpop.f32.mrf.mxu0
    %v579 = vadd.f32 %v566, %v578
    %v580 = vpop.f32.mrf.mxu0
    %581 = vdwg.mxu0
    %582 = vmatpush.bf16.msra.mxu0 %v467
    %583 = vmatpush.bf16.msra.mxu0 %v466
    %584 = vmatpush.bf16.msra.mxu0 %v465
    %585 = vmatpush.bf16.msra.mxu0 %v464
    %586 = vmatpush.bf16.msra.mxu0 %v463
    %587 = vmatpush.bf16.msra.mxu0 %v462
    %588 = vmatpush.bf16.msra.mxu0 %v461
    %589 = vmatpush.bf16.msra.mxu0 %v460
    %590 = vmatmul.bf16.gmra.mxu0 %v212
    %v591 = vpop.f32.mrf.mxu0
    %v592 = vadd.f32 %v579, %v591
    %v593 = vpop.f32.mrf.mxu0
    %594 = vdwg.mxu0
    %595 = vmatpush.bf16.msra.mxu0 %v475
    %596 = vmatpush.bf16.msra.mxu0 %v474
    %597 = vmatpush.bf16.msra.mxu0 %v473
    %598 = vmatpush.bf16.msra.mxu0 %v472
    %599 = vmatpush.bf16.msra.mxu0 %v471
    %600 = vmatpush.bf16.msra.mxu0 %v470
    %601 = vmatpush.bf16.msra.mxu0 %v469
    %602 = vmatpush.bf16.msra.mxu0 %v468
    %603 = vmatmul.bf16.gmra.mxu0 %v213
    %v604 = vpop.f32.mrf.mxu0
    %v605 = vadd.f32 %v592, %v604
    %v606 = vpop.f32.mrf.mxu0
    %607 = vdwg.mxu0
    %608 = vmatpush.bf16.msra.mxu0 %v483
    %609 = vmatpush.bf16.msra.mxu0 %v482
    %610 = vmatpush.bf16.msra.mxu0 %v481
    %611 = vmatpush.bf16.msra.mxu0 %v480
    %612 = vmatpush.bf16.msra.mxu0 %v479
    %613 = vmatpush.bf16.msra.mxu0 %v478
    %614 = vmatpush.bf16.msra.mxu0 %v477
    %615 = vmatpush.bf16.msra.mxu0 %v476
    %616 = vmatmul.bf16.gmra.mxu0 %v214
    %v617 = vpop.f32.mrf.mxu0
    %v618 = vadd.f32 %v605, %v617
    %v619 = vpop.f32.mrf.mxu0
    %620 = vdwg.mxu0
    %621 = vmatpush.bf16.msra.mxu0 %v491
    %622 = vmatpush.bf16.msra.mxu0 %v490
    %623 = vmatpush.bf16.msra.mxu0 %v489
    %624 = vmatpush.bf16.msra.mxu0 %v488
    %625 = vmatpush.bf16.msra.mxu0 %v487
    %626 = vmatpush.bf16.msra.mxu0 %v486
    %627 = vmatpush.bf16.msra.mxu0 %v485
    %628 = vmatpush.bf16.msra.mxu0 %v484
    %629 = vmatmul.bf16.gmra.mxu0 %v215
    %v630 = vpop.f32.mrf.mxu0
    %v631 = vadd.f32 %v618, %v630
    %v632 = vpop.f32.mrf.mxu0
    %633 = vdwg.mxu0
    %634 = vmatpush.bf16.msra.mxu0 %v499
    %635 = vmatpush.bf16.msra.mxu0 %v498
    %636 = vmatpush.bf16.msra.mxu0 %v497
    %637 = vmatpush.bf16.msra.mxu0 %v496
    %638 = vmatpush.bf16.msra.mxu0 %v495
    %639 = vmatpush.bf16.msra.mxu0 %v494
    %640 = vmatpush.bf16.msra.mxu0 %v493
    %641 = vmatpush.bf16.msra.mxu0 %v492
    %642 = vmatmul.bf16.gmra.mxu0 %v216
    %v643 = vpop.f32.mrf.mxu0
    %v644 = vadd.f32 %v631, %v643
    %v645 = vpop.f32.mrf.mxu0
    %646 = vdwg.mxu0
    %v647 = vmax.f32 %v644, 0.0
    %v648 = vld [vmem:[%s3] sm:$0xf]
    %v649 = vld [vmem:[%s3 + $0x4] sm:$0xf]
    %v650 = vld [vmem:[%s3 + $0x8] sm:$0xf]
    %v651 = vld [vmem:[%s3 + $0xc] sm:$0xf]
    %v652 = vld [vmem:[%s3 + $0x10] sm:$0xf]
    %v653 = vld [vmem:[%s3 + $0x14] sm:$0xf]
    %v654 = vld [vmem:[%s3 + $0x18] sm:$0xf]
    %v655 = vld [vmem:[%s3 + $0x1c] sm:$0xf]
    %v656 = vld [vmem:[%s3 + $0x20] sm:$0xf]
    %v657 = vld [vmem:[%s3 + $0x24] sm:$0xf]
    %v658 = vld [vmem:[%s3 + $0x28] sm:$0xf]
    %v659 = vld [vmem:[%s3 + $0x2c] sm:$0xf]
    %v660 = vld [vmem:[%s3 + $0x30] sm:$0xf]
    %v661 = vld [vmem:[%s3 + $0x34] sm:$0xf]
    %v662 = vld [vmem:[%s3 + $0x38] sm:$0xf]
    %v663 = vld [vmem:[%s3 + $0x3c] sm:$0xf]
    %v664 = vld [vmem:[%s4] sm:$0x1]
    %v665 = vpack.c.bf16 %v647, %v647
    %v667 = vperm.slane %v664, 0
    %v685 = vunpack.c.l.b16 %v648
    %v686 = vunpack.c.l.b16 %v649
    %v687 = vunpack.c.l.b16 %v650
    %v688 = vunpack.c.l.b16 %v651
    %v689 = vunpack.c.l.b16 %v652
    %v690 = vunpack.c.l.b16 %v653
    %v691 = vunpack.c.l.b16 %v654
    %v692 = vunpack.c.l.b16 %v655
    %v693 = vunpack.c.l.b16 %v656
    %v694 = vunpack.c.l.b16 %v657
    %v695 = vunpack.c.l.b16 %v658
    %v696 = vunpack.c.l.b16 %v659
    %v697 = vunpack.c.l.b16 %v660
    %v698 = vunpack.c.l.b16 %v661
    %v699 = vunpack.c.l.b16 %v662
    %v700 = vunpack.c.l.b16 %v663
    %v701 = vpack.c.b16 %v686, %v685
    %v702 = vpack.c.b16 %v688, %v687
    %v703 = vpack.c.b16 %v690, %v689
    %v704 = vpack.c.b16 %v692, %v691
    %v705 = vpack.c.b16 %v694, %v693
    %v706 = vpack.c.b16 %v696, %v695
    %v707 = vpack.c.b16 %v698, %v697
    %v708 = vpack.c.b16 %v700, %v699
    %717 = vmatpush.bf16.msra.mxu0 %v708
    %718 = vmatpush.bf16.msra.mxu0 %v707
    %719 = vmatpush.bf16.msra.mxu0 %v706
    %720 = vmatpush.bf16.msra.mxu0 %v705
    %721 = vmatpush.bf16.msra.mxu0 %v704
    %722 = vmatpush.bf16.msra.mxu0 %v703
    %723 = vmatpush.bf16.msra.mxu0 %v702
    %724 = vmatpush.bf16.msra.mxu0 %v701
    %725 = vmatmul.bf16.gmra.mxu0 %v665
    %v726 = vpop.f32.mrf.mxu0
    %v727 = vadd.f32 %v667, %v726
    %v728 = vpop.f32.mrf.mxu0
    %729 = vdwg.mxu0
    %v730 = vmax.f32 %v727, 0.0
    %v731 = vld [vmem:[%s5] sm:$0xf]
    %v732 = vld [vmem:[%s5 + $0x4] sm:$0xf]
    %v733 = vld [vmem:[%s5 + $0x8] sm:$0xf]
    %v734 = vld [vmem:[%s5 + $0xc] sm:$0xf]
    %v735 = vld [vmem:[%s5 + $0x10] sm:$0xf]
    %v736 = vld [vmem:[%s5 + $0x14] sm:$0xf]
    %v737 = vld [vmem:[%s5 + $0x18] sm:$0xf]
    %v738 = vld [vmem:[%s5 + $0x1c] sm:$0xf]
    %v739 = vld [vmem:[%s6] sm:$0x1]
    %v740 = vpack.c.bf16 %v730, %v730
    %v742 = vperm.slane %v739, 0
    %v752 = vunpack.c.l.b16 %v731
    %v753 = vunpack.c.l.b16 %v732
    %v754 = vunpack.c.l.b16 %v733
    %v755 = vunpack.c.l.b16 %v734
    %v756 = vunpack.c.l.b16 %v735
    %v757 = vunpack.c.l.b16 %v736
    %v758 = vunpack.c.l.b16 %v737
    %v759 = vunpack.c.l.b16 %v738
    %v760 = vpack.c.b16 %v753, %v752
    %v761 = vpack.c.b16 %v755, %v754
    %v762 = vpack.c.b16 %v757, %v756
    %v763 = vpack.c.b16 %v759, %v758
    %vm768 = vcmask 523264
    %v770 = vsel %vm768, %v740, 0
    %772 = vmatpush.bf16.msra.mxu0 0
    %773 = vmatpush.bf16.msra.mxu0 0
    %774 = vmatpush.bf16.msra.mxu0 0
    %775 = vmatpush.bf16.msra.mxu0 0
    %776 = vmatpush.bf16.msra.mxu0 %v763
    %777 = vmatpush.bf16.msra.mxu0 %v762
    %778 = vmatpush.bf16.msra.mxu0 %v761
    %779 = vmatpush.bf16.msra.mxu0 %v760
    %780 = vmatmul.bf16.gmra.mxu0 %v770
    %v781 = vpop.f32.mrf.mxu0
    %v782 = vadd.f32 %v742, %v781
    %v783 = vpop.f32.mrf.mxu0
    %784 = vdwg.mxu0
    %v785 = vmax.f32 %v782, 0.0
    %v786 = vld [vmem:[%s7] sm:$0xf]
    %v787 = vld [vmem:[%s7 + $0x4] sm:$0x3]
    %v788 = vld [vmem:[%s8] sm:$0x1]
    %v789 = vpack.c.bf16 %v785, %v785
    %v791 = vperm.slane %v788, 0
    %v795 = vunpack.c.l.b16 %v786
    %v796 = vunpack.c.l.b16 %v787
    %v797 = vpack.c.b16 %v796, %v795
    %vm798 = vcmask 97280
    %v800 = vsel %vm798, %v789, 0
    %vm802 = vcmask 1045504
    %v804 = vsel %vm802, %v797, 0
    %806 = vmatpush.bf16.msra.mxu0 0
    %807 = vmatpush.bf16.msra.mxu0 0
    %808 = vmatpush.bf16.msra.mxu0 0
    %809 = vmatpush.bf16.msra.mxu0 0
    %810 = vmatpush.bf16.msra.mxu0 0
    %811 = vmatpush.bf16.msra.mxu0 0
    %812 = vmatpush.bf16.msra.mxu0 0
    %813 = vmatpush.bf16.msra.mxu0 %v804
    %814 = vmatmul.bf16.gmra.mxu0 %v800
    %v815 = vpop.f32.mrf.mxu0
    %v816 = vadd.f32 %v791, %v815
    %v817 = vpop.f32.mrf.mxu0
    %818 = vdwg.mxu0
    %v819 = vld [vmem:[%s9] sm:$0x3]
    %v820 = vld [vmem:[%s10] sm:$0x1]
    %v821 = vpack.c.bf16 %v816, %v816
    %v823 = vperm.slane %v820, 0
    %vm825 = vcmask 23552
    %v827 = vsel %vm825, %v821, 0
    %vm829 = vcmask 1040384
    %vm830 = vcmask 1041408
    %v831 = vsel %vm829, 4294967295, 65535
    %v832 = vsel %vm830, %v831, 0
    %v834 = vand.u32 %v819, %v832
    %836 = vmatpush.bf16.msra.mxu0 0
    %837 = vmatpush.bf16.msra.mxu0 0
    %838 = vmatpush.bf16.msra.mxu0 0
    %839 = vmatpush.bf16.msra.mxu0 0
    %840 = vmatpush.bf16.msra.mxu0 0
    %841 = vmatpush.bf16.msra.mxu0 0
    %842 = vmatpush.bf16.msra.mxu0 0
    %843 = vmatpush.bf16.msra.mxu0 %v834
    %844 = vmatmul.bf16.gmra.mxu0 %v827
    %v845 = vpop.f32.mrf.mxu0
    %v846 = vadd.f32 %v823, %v845
    %v847 = vpop.f32.mrf.mxu0
    %848 = vdwg.mxu0
    %v849 = vmax.f32 %v846, 0.0
    %v850 = vld [vmem:[%s11] sm:$0xf]
    %v851 = vld [vmem:[%s11 + $0x4] sm:$0x3]
    %v852 = vld [vmem:[%s12] sm:$0x1]
    %v853 = vpack.c.bf16 %v849, %v849
    %v855 = vperm.slane %v852, 0
    %v859 = vunpack.c.l.b16 %v850
    %v860 = vunpack.c.l.b16 %v851
    %v861 = vpack.c.b16 %v860, %v859
    %v863 = vsel %vm798, %v853, 0
    %v866 = vsel %vm802, %v861, 0
    %868 = vmatpush.bf16.msra.mxu0 0
    %869 = vmatpush.bf16.msra.mxu0 0
    %870 = vmatpush.bf16.msra.mxu0 0
    %871 = vmatpush.bf16.msra.mxu0 0
    %872 = vmatpush.bf16.msra.mxu0 0
    %873 = vmatpush.bf16.msra.mxu0 0
    %874 = vmatpush.bf16.msra.mxu0 0
    %875 = vmatpush.bf16.msra.mxu0 %v866
    %876 = vmatmul.bf16.gmra.mxu0 %v863
    %v877 = vpop.f32.mrf.mxu0
    %v878 = vadd.f32 %v855, %v877
    %v879 = vpop.f32.mrf.mxu0
    %880 = vdwg.mxu0
    %v881 = vmax.f32 %v878, 0.0
    %v882 = vld [vmem:[%s13] sm:$0xf]
    %v883 = vld [vmem:[%s13 + $0x4] sm:$0xf]
    %v884 = vld [vmem:[%s13 + $0x8] sm:$0xf]
    %v885 = vld [vmem:[%s13 + $0xc] sm:$0xf]
    %v886 = vld [vmem:[%s13 + $0x10] sm:$0xf]
    %v887 = vld [vmem:[%s13 + $0x14] sm:$0xf]
    %v888 = vld [vmem:[%s13 + $0x18] sm:$0xf]
    %v889 = vld [vmem:[%s13 + $0x1c] sm:$0xf]
    %v890 = vld [vmem:[%s14] sm:$0x1]
    %v891 = vpack.c.bf16 %v881, %v881
    %v893 = vperm.slane %v890, 0
    %v903 = vunpack.c.l.b16 %v882
    %v904 = vunpack.c.l.b16 %v883
    %v905 = vunpack.c.l.b16 %v884
    %v906 = vunpack.c.l.b16 %v885
    %v907 = vunpack.c.l.b16 %v886
    %v908 = vunpack.c.l.b16 %v887
    %v909 = vunpack.c.l.b16 %v888
    %v910 = vunpack.c.l.b16 %v889
    %v911 = vpack.c.b16 %v904, %v903
    %v912 = vpack.c.b16 %v906, %v905
    %v913 = vpack.c.b16 %v908, %v907
    %v914 = vpack.c.b16 %v910, %v909
    %v920 = vsel %vm768, %v891, 0
    %922 = vmatpush.bf16.msra.mxu0 0
    %923 = vmatpush.bf16.msra.mxu0 0
    %924 = vmatpush.bf16.msra.mxu0 0
    %925 = vmatpush.bf16.msra.mxu0 0
    %926 = vmatpush.bf16.msra.mxu0 %v914
    %927 = vmatpush.bf16.msra.mxu0 %v913
    %928 = vmatpush.bf16.msra.mxu0 %v912
    %929 = vmatpush.bf16.msra.mxu0 %v911
    %930 = vmatmul.bf16.gmra.mxu0 %v920
    %v931 = vpop.f32.mrf.mxu0
    %v932 = vadd.f32 %v893, %v931
    %v933 = vpop.f32.mrf.mxu0
    %934 = vdwg.mxu0
    %v935 = vmax.f32 %v932, 0.0
    %v936 = vld [vmem:[#allocation5] sm:$0xff]
    %v937 = vld [vmem:[#allocation5 + $0x8] sm:$0xff]
    %v938 = vld [vmem:[#allocation5 + $0x10] sm:$0xff]
    %v939 = vld [vmem:[#allocation5 + $0x18] sm:$0xf]
    %v940 = vld [vmem:[#allocation5 + $0x1c] sm:$0xff]
    %v941 = vld [vmem:[#allocation5 + $0x24] sm:$0xff]
    %v942 = vld [vmem:[#allocation5 + $0x2c] sm:$0xff]
    %v943 = vld [vmem:[#allocation5 + $0x34] sm:$0xf]
    %v944 = vld [vmem:[#allocation5 + $0x38] sm:$0xff]
    %v945 = vld [vmem:[#allocation5 + $0x40] sm:$0xff]
    %v946 = vld [vmem:[#allocation5 + $0x48] sm:$0xff]
    %v947 = vld [vmem:[#allocation5 + $0x50] sm:$0xf]
    %v948 = vld [vmem:[#allocation5 + $0x54] sm:$0xff]
    %v949 = vld [vmem:[#allocation5 + $0x5c] sm:$0xff]
    %v950 = vld [vmem:[#allocation5 + $0x64] sm:$0xff]
    %v951 = vld [vmem:[#allocation5 + $0x6c] sm:$0xf]
    %v952 = vld [vmem:[#allocation5 + $0x70] sm:$0xff]
    %v953 = vld [vmem:[#allocation5 + $0x78] sm:$0xff]
    %v954 = vld [vmem:[#allocation5 + $0x80] sm:$0xff]
    %v955 = vld [vmem:[#allocation5 + $0x88] sm:$0xf]
    %v956 = vld [vmem:[#allocation5 + $0x8c] sm:$0xff]
    %v957 = vld [vmem:[#allocation5 + $0x94] sm:$0xff]
    %v958 = vld [vmem:[#allocation5 + $0x9c] sm:$0xff]
    %v959 = vld [vmem:[#allocation5 + $0xa4] sm:$0xf]
    %v960 = vld [vmem:[#allocation5 + $0xa8] sm:$0xff]
    %v961 = vld [vmem:[#allocation5 + $0xb0] sm:$0xff]
    %v962 = vld [vmem:[#allocation5 + $0xb8] sm:$0xff]
    %v963 = vld [vmem:[#allocation5 + $0xc0] sm:$0xf]
    %v964 = vld [vmem:[#allocation5 + $0xc4] sm:$0xff]
    %v965 = vld [vmem:[#allocation5 + $0xcc] sm:$0xff]
    %v966 = vld [vmem:[#allocation5 + $0xd4] sm:$0xff]
    %v967 = vld [vmem:[#allocation5 + $0xdc] sm:$0xf]
    %v968 = vld [vmem:[#allocation5 + $0xe0] sm:$0xff]
    %v969 = vld [vmem:[#allocation5 + $0xe8] sm:$0xff]
    %v970 = vld [vmem:[#allocation5 + $0xf0] sm:$0xff]
    %v971 = vld [vmem:[#allocation5 + $0xf8] sm:$0xf]
    %v972 = vld [vmem:[#allocation5 + $0xfc] sm:$0xff]
    %v973 = vld [vmem:[#allocation5 + $0x104] sm:$0xff]
    %v974 = vld [vmem:[#allocation5 + $0x10c] sm:$0xff]
    %v975 = vld [vmem:[#allocation5 + $0x114] sm:$0xf]
    %v976 = vld [vmem:[#allocation5 + $0x118] sm:$0xff]
    %v977 = vld [vmem:[#allocation5 + $0x120] sm:$0xff]
    %v978 = vld [vmem:[#allocation5 + $0x128] sm:$0xff]
    %v979 = vld [vmem:[#allocation5 + $0x130] sm:$0xf]
    %v980 = vld [vmem:[#allocation5 + $0x134] sm:$0xff]
    %v981 = vld [vmem:[#allocation5 + $0x13c] sm:$0xff]
    %v982 = vld [vmem:[#allocation5 + $0x144] sm:$0xff]
    %v983 = vld [vmem:[#allocation5 + $0x14c] sm:$0xf]
    %v984 = vld [vmem:[#allocation5 + $0x150] sm:$0xff]
    %v985 = vld [vmem:[#allocation5 + $0x158] sm:$0xff]
    %v986 = vld [vmem:[#allocation5 + $0x160] sm:$0xff]
    %v987 = vld [vmem:[#allocation5 + $0x168] sm:$0xf]
    %v988 = vld [vmem:[#allocation5 + $0x16c] sm:$0xff]
    %v989 = vld [vmem:[#allocation5 + $0x174] sm:$0xff]
    %v990 = vld [vmem:[#allocation5 + $0x17c] sm:$0xff]
    %v991 = vld [vmem:[#allocation5 + $0x184] sm:$0xf]
    %v992 = vld [vmem:[#allocation5 + $0x188] sm:$0xff]
    %v993 = vld [vmem:[#allocation5 + $0x190] sm:$0xff]
    %v994 = vld [vmem:[#allocation5 + $0x198] sm:$0xff]
    %v995 = vld [vmem:[#allocation5 + $0x1a0] sm:$0xf]
    %v996 = vld [vmem:[#allocation5 + $0x1a4] sm:$0xff]
    %v997 = vld [vmem:[#allocation5 + $0x1ac] sm:$0xff]
    %v998 = vld [vmem:[#allocation5 + $0x1b4] sm:$0xff]
    %v999 = vld [vmem:[#allocation5 + $0x1bc] sm:$0xf]
    %v1000 = vld [vmem:[%s16] sm:$0xff]
    %v1001 = vpack.c.bf16 %v935, %v935
    %v1003 = vperm.slane %v1000, 0
    %v1004 = vperm.slane %v1000, 1
    %v1005 = vperm.slane %v1000, 2
    %v1006 = vperm.slane %v1000, 3
    %v1007 = vperm.slane %v1000, 4
    %v1008 = vperm.slane %v1000, 5
    %v1009 = vperm.slane %v1000, 6
    %v1081 = vunpack.c.l.b16 %v936
    %v1082 = vunpack.c.h.b16 %v936
    %v1083 = vunpack.c.l.b16 %v937
    %v1084 = vunpack.c.h.b16 %v937
    %v1085 = vunpack.c.l.b16 %v938
    %v1086 = vunpack.c.h.b16 %v938
    %v1087 = vunpack.c.l.b16 %v939
    %v1088 = vunpack.c.l.b16 %v940
    %v1089 = vunpack.c.h.b16 %v940
    %v1090 = vunpack.c.l.b16 %v941
    %v1091 = vunpack.c.h.b16 %v941
    %v1092 = vunpack.c.l.b16 %v942
    %v1093 = vunpack.c.h.b16 %v942
    %v1094 = vunpack.c.l.b16 %v943
    %v1095 = vunpack.c.l.b16 %v944
    %v1096 = vunpack.c.h.b16 %v944
    %v1097 = vunpack.c.l.b16 %v945
    %v1098 = vunpack.c.h.b16 %v945
    %v1099 = vunpack.c.l.b16 %v946
    %v1100 = vunpack.c.h.b16 %v946
    %v1101 = vunpack.c.l.b16 %v947
    %v1102 = vunpack.c.l.b16 %v948
    %v1103 = vunpack.c.h.b16 %v948
    %v1104 = vunpack.c.l.b16 %v949
    %v1105 = vunpack.c.h.b16 %v949
    %v1106 = vunpack.c.l.b16 %v950
    %v1107 = vunpack.c.h.b16 %v950
    %v1108 = vunpack.c.l.b16 %v951
    %v1109 = vunpack.c.l.b16 %v952
    %v1110 = vunpack.c.h.b16 %v952
    %v1111 = vunpack.c.l.b16 %v953
    %v1112 = vunpack.c.h.b16 %v953
    %v1113 = vunpack.c.l.b16 %v954
    %v1114 = vunpack.c.h.b16 %v954
    %v1115 = vunpack.c.l.b16 %v955
    %v1116 = vunpack.c.l.b16 %v956
    %v1117 = vunpack.c.h.b16 %v956
    %v1118 = vunpack.c.l.b16 %v957
    %v1119 = vunpack.c.h.b16 %v957
    %v1120 = vunpack.c.l.b16 %v958
    %v1121 = vunpack.c.h.b16 %v958
    %v1122 = vunpack.c.l.b16 %v959
    %v1123 = vunpack.c.l.b16 %v960
    %v1124 = vunpack.c.h.b16 %v960
    %v1125 = vunpack.c.l.b16 %v961
    %v1126 = vunpack.c.h.b16 %v961
    %v1127 = vunpack.c.l.b16 %v962
    %v1128 = vunpack.c.h.b16 %v962
    %v1129 = vunpack.c.l.b16 %v963
    %v1130 = vunpack.c.l.b16 %v964
    %v1131 = vunpack.c.h.b16 %v964
    %v1132 = vunpack.c.l.b16 %v965
    %v1133 = vunpack.c.h.b16 %v965
    %v1134 = vunpack.c.l.b16 %v966
    %v1135 = vunpack.c.h.b16 %v966
    %v1136 = vunpack.c.l.b16 %v967
    %v1137 = vunpack.c.l.b16 %v968
    %v1138 = vunpack.c.h.b16 %v968
    %v1139 = vunpack.c.l.b16 %v969
    %v1140 = vunpack.c.h.b16 %v969
    %v1141 = vunpack.c.l.b16 %v970
    %v1142 = vunpack.c.h.b16 %v970
    %v1143 = vunpack.c.l.b16 %v971
    %v1144 = vunpack.c.l.b16 %v972
    %v1145 = vunpack.c.h.b16 %v972
    %v1146 = vunpack.c.l.b16 %v973
    %v1147 = vunpack.c.h.b16 %v973
    %v1148 = vunpack.c.l.b16 %v974
    %v1149 = vunpack.c.h.b16 %v974
    %v1150 = vunpack.c.l.b16 %v975
    %v1151 = vunpack.c.l.b16 %v976
    %v1152 = vunpack.c.h.b16 %v976
    %v1153 = vunpack.c.l.b16 %v977
    %v1154 = vunpack.c.h.b16 %v977
    %v1155 = vunpack.c.l.b16 %v978
    %v1156 = vunpack.c.h.b16 %v978
    %v1157 = vunpack.c.l.b16 %v979
    %v1158 = vunpack.c.l.b16 %v980
    %v1159 = vunpack.c.h.b16 %v980
    %v1160 = vunpack.c.l.b16 %v981
    %v1161 = vunpack.c.h.b16 %v981
    %v1162 = vunpack.c.l.b16 %v982
    %v1163 = vunpack.c.h.b16 %v982
    %v1164 = vunpack.c.l.b16 %v983
    %v1165 = vunpack.c.l.b16 %v984
    %v1166 = vunpack.c.h.b16 %v984
    %v1167 = vunpack.c.l.b16 %v985
    %v1168 = vunpack.c.h.b16 %v985
    %v1169 = vunpack.c.l.b16 %v986
    %v1170 = vunpack.c.h.b16 %v986
    %v1171 = vunpack.c.l.b16 %v987
    %v1172 = vunpack.c.l.b16 %v988
    %v1173 = vunpack.c.h.b16 %v988
    %v1174 = vunpack.c.l.b16 %v989
    %v1175 = vunpack.c.h.b16 %v989
    %v1176 = vunpack.c.l.b16 %v990
    %v1177 = vunpack.c.h.b16 %v990
    %v1178 = vunpack.c.l.b16 %v991
    %v1179 = vunpack.c.l.b16 %v992
    %v1180 = vunpack.c.h.b16 %v992
    %v1181 = vunpack.c.l.b16 %v993
    %v1182 = vunpack.c.h.b16 %v993
    %v1183 = vunpack.c.l.b16 %v994
    %v1184 = vunpack.c.h.b16 %v994
    %v1185 = vunpack.c.l.b16 %v995
    %v1186 = vunpack.c.l.b16 %v996
    %v1187 = vunpack.c.h.b16 %v996
    %v1188 = vunpack.c.l.b16 %v997
    %v1189 = vunpack.c.h.b16 %v997
    %v1190 = vunpack.c.l.b16 %v998
    %v1191 = vunpack.c.h.b16 %v998
    %v1192 = vunpack.c.l.b16 %v999
    %v1193 = vpack.c.b16 %v1088, %v1081
    %v1194 = vpack.c.b16 %v1089, %v1082
    %v1195 = vpack.c.b16 %v1090, %v1083
    %v1196 = vpack.c.b16 %v1091, %v1084
    %v1197 = vpack.c.b16 %v1092, %v1085
    %v1198 = vpack.c.b16 %v1093, %v1086
    %v1199 = vpack.c.b16 %v1094, %v1087
    %v1200 = vpack.c.b16 %v1102, %v1095
    %v1201 = vpack.c.b16 %v1103, %v1096
    %v1202 = vpack.c.b16 %v1104, %v1097
    %v1203 = vpack.c.b16 %v1105, %v1098
    %v1204 = vpack.c.b16 %v1106, %v1099
    %v1205 = vpack.c.b16 %v1107, %v1100
    %v1206 = vpack.c.b16 %v1108, %v1101
    %v1207 = vpack.c.b16 %v1116, %v1109
    %v1208 = vpack.c.b16 %v1117, %v1110
    %v1209 = vpack.c.b16 %v1118, %v1111
    %v1210 = vpack.c.b16 %v1119, %v1112
    %v1211 = vpack.c.b16 %v1120, %v1113
    %v1212 = vpack.c.b16 %v1121, %v1114
    %v1213 = vpack.c.b16 %v1122, %v1115
    %v1214 = vpack.c.b16 %v1130, %v1123
    %v1215 = vpack.c.b16 %v1131, %v1124
    %v1216 = vpack.c.b16 %v1132, %v1125
    %v1217 = vpack.c.b16 %v1133, %v1126
    %v1218 = vpack.c.b16 %v1134, %v1127
    %v1219 = vpack.c.b16 %v1135, %v1128
    %v1220 = vpack.c.b16 %v1136, %v1129
    %v1221 = vpack.c.b16 %v1144, %v1137
    %v1222 = vpack.c.b16 %v1145, %v1138
    %v1223 = vpack.c.b16 %v1146, %v1139
    %v1224 = vpack.c.b16 %v1147, %v1140
    %v1225 = vpack.c.b16 %v1148, %v1141
    %v1226 = vpack.c.b16 %v1149, %v1142
    %v1227 = vpack.c.b16 %v1150, %v1143
    %v1228 = vpack.c.b16 %v1158, %v1151
    %v1229 = vpack.c.b16 %v1159, %v1152
    %v1230 = vpack.c.b16 %v1160, %v1153
    %v1231 = vpack.c.b16 %v1161, %v1154
    %v1232 = vpack.c.b16 %v1162, %v1155
    %v1233 = vpack.c.b16 %v1163, %v1156
    %v1234 = vpack.c.b16 %v1164, %v1157
    %v1235 = vpack.c.b16 %v1172, %v1165
    %v1236 = vpack.c.b16 %v1173, %v1166
    %v1237 = vpack.c.b16 %v1174, %v1167
    %v1238 = vpack.c.b16 %v1175, %v1168
    %v1239 = vpack.c.b16 %v1176, %v1169
    %v1240 = vpack.c.b16 %v1177, %v1170
    %v1241 = vpack.c.b16 %v1178, %v1171
    %v1242 = vpack.c.b16 %v1186, %v1179
    %v1243 = vpack.c.b16 %v1187, %v1180
    %v1244 = vpack.c.b16 %v1188, %v1181
    %v1245 = vpack.c.b16 %v1189, %v1182
    %v1246 = vpack.c.b16 %v1190, %v1183
    %v1247 = vpack.c.b16 %v1191, %v1184
    %v1248 = vpack.c.b16 %v1192, %v1185
    %1305 = vmatpush.bf16.msra.mxu0 %v1242
    %1306 = vmatpush.bf16.msra.mxu0 %v1235
    %1307 = vmatpush.bf16.msra.mxu0 %v1228
    %1308 = vmatpush.bf16.msra.mxu0 %v1221
    %1309 = vmatpush.bf16.msra.mxu0 %v1214
    %1310 = vmatpush.bf16.msra.mxu0 %v1207
    %1311 = vmatpush.bf16.msra.mxu0 %v1200
    %1312 = vmatpush.bf16.msra.mxu0 %v1193
    %1313 = vmatmul.bf16.gmra.mxu0 %v1001
    %v1314 = vpop.f32.mrf.mxu0
    %v1315 = vadd.f32 %v1003, %v1314
    %v1316 = vpop.f32.mrf.mxu0
    %1317 = vdwg.mxu0
    %1318 = vmatpush.bf16.msra.mxu0 %v1243
    %1319 = vmatpush.bf16.msra.mxu0 %v1236
    %1320 = vmatpush.bf16.msra.mxu0 %v1229
    %1321 = vmatpush.bf16.msra.mxu0 %v1222
    %1322 = vmatpush.bf16.msra.mxu0 %v1215
    %1323 = vmatpush.bf16.msra.mxu0 %v1208
    %1324 = vmatpush.bf16.msra.mxu0 %v1201
    %1325 = vmatpush.bf16.msra.mxu0 %v1194
    %1326 = vmatmul.bf16.gmra.mxu0 %v1001
    %v1327 = vpop.f32.mrf.mxu0
    %v1328 = vadd.f32 %v1004, %v1327
    %v1329 = vpop.f32.mrf.mxu0
    %1330 = vdwg.mxu0
    %1331 = vmatpush.bf16.msra.mxu0 %v1244
    %1332 = vmatpush.bf16.msra.mxu0 %v1237
    %1333 = vmatpush.bf16.msra.mxu0 %v1230
    %1334 = vmatpush.bf16.msra.mxu0 %v1223
    %1335 = vmatpush.bf16.msra.mxu0 %v1216
    %1336 = vmatpush.bf16.msra.mxu0 %v1209
    %1337 = vmatpush.bf16.msra.mxu0 %v1202
    %1338 = vmatpush.bf16.msra.mxu0 %v1195
    %1339 = vmatmul.bf16.gmra.mxu0 %v1001
    %v1340 = vpop.f32.mrf.mxu0
    %v1341 = vadd.f32 %v1005, %v1340
    %v1342 = vpop.f32.mrf.mxu0
    %1343 = vdwg.mxu0
    %1344 = vmatpush.bf16.msra.mxu0 %v1245
    %1345 = vmatpush.bf16.msra.mxu0 %v1238
    %1346 = vmatpush.bf16.msra.mxu0 %v1231
    %1347 = vmatpush.bf16.msra.mxu0 %v1224
    %1348 = vmatpush.bf16.msra.mxu0 %v1217
    %1349 = vmatpush.bf16.msra.mxu0 %v1210
    %1350 = vmatpush.bf16.msra.mxu0 %v1203
    %1351 = vmatpush.bf16.msra.mxu0 %v1196
    %1352 = vmatmul.bf16.gmra.mxu0 %v1001
    %v1353 = vpop.f32.mrf.mxu0
    %v1354 = vadd.f32 %v1006, %v1353
    %v1355 = vpop.f32.mrf.mxu0
    %1356 = vdwg.mxu0
    %1357 = vmatpush.bf16.msra.mxu0 %v1246
    %1358 = vmatpush.bf16.msra.mxu0 %v1239
    %1359 = vmatpush.bf16.msra.mxu0 %v1232
    %1360 = vmatpush.bf16.msra.mxu0 %v1225
    %1361 = vmatpush.bf16.msra.mxu0 %v1218
    %1362 = vmatpush.bf16.msra.mxu0 %v1211
    %1363 = vmatpush.bf16.msra.mxu0 %v1204
    %1364 = vmatpush.bf16.msra.mxu0 %v1197
    %1365 = vmatmul.bf16.gmra.mxu0 %v1001
    %v1366 = vpop.f32.mrf.mxu0
    %v1367 = vadd.f32 %v1007, %v1366
    %v1368 = vpop.f32.mrf.mxu0
    %1369 = vdwg.mxu0
    %1370 = vmatpush.bf16.msra.mxu0 %v1247
    %1371 = vmatpush.bf16.msra.mxu0 %v1240
    %1372 = vmatpush.bf16.msra.mxu0 %v1233
    %1373 = vmatpush.bf16.msra.mxu0 %v1226
    %1374 = vmatpush.bf16.msra.mxu0 %v1219
    %1375 = vmatpush.bf16.msra.mxu0 %v1212
    %1376 = vmatpush.bf16.msra.mxu0 %v1205
    %1377 = vmatpush.bf16.msra.mxu0 %v1198
    %1378 = vmatmul.bf16.gmra.mxu0 %v1001
    %v1379 = vpop.f32.mrf.mxu0
    %v1380 = vadd.f32 %v1008, %v1379
    %v1381 = vpop.f32.mrf.mxu0
    %1382 = vdwg.mxu0
    %1383 = vmatpush.bf16.msra.mxu0 %v1248
    %1384 = vmatpush.bf16.msra.mxu0 %v1241
    %1385 = vmatpush.bf16.msra.mxu0 %v1234
    %1386 = vmatpush.bf16.msra.mxu0 %v1227
    %1387 = vmatpush.bf16.msra.mxu0 %v1220
    %1388 = vmatpush.bf16.msra.mxu0 %v1213
    %1389 = vmatpush.bf16.msra.mxu0 %v1206
    %1390 = vmatpush.bf16.msra.mxu0 %v1199
    %1391 = vmatmul.bf16.gmra.mxu0 %v1001
    %v1392 = vpop.f32.mrf.mxu0
    %v1393 = vadd.f32 %v1009, %v1392
    %v1394 = vpop.f32.mrf.mxu0
    %1395 = vdwg.mxu0
    %v1396 = vtanh.pop %v1315
    %v1397 = vtanh.pop %v1328
    %v1398 = vtanh.pop %v1341
    %v1399 = vtanh.pop %v1354
    %v1400 = vtanh.pop %v1367
    %v1401 = vtanh.pop %v1380
    %v1402 = vtanh.pop %v1393
    %1403 = vst [vmem:[#allocation7] sm:$0xff] %v1396
    %1404 = vst [vmem:[#allocation7 + $0x8] sm:$0xff] %v1397
    %1405 = vst [vmem:[#allocation7 + $0x10] sm:$0xff] %v1398
    %1406 = vst [vmem:[#allocation7 + $0x18] sm:$0xff] %v1399
    %1407 = vst [vmem:[#allocation7 + $0x20] sm:$0xff] %v1400
    %1408 = vst [vmem:[#allocation7 + $0x28] sm:$0xff] %v1401
    %1409 = vst [vmem:[#allocation7 + $0x30] sm:$0xff] %v1402
    // Predicated region
    $region78: #{tpu_custom_call.1} parent=1 // pred_check
      _
    $region79: #{tpu_custom_call.1} parent=1 // pred_check_branch
      %1411 = sbr.rel (0) target = $region81
    $region80: #{tpu_custom_call.1} parent=1 // pred_region
      %1413 = vsyncadd [#allocation4], 0
      %s1415 = sshll.u32 [#allocation7], 4
      %s1416 = int_to_ptr.vmem [resolvable:$true] %s1415
      %s1417 = sshll.u32 %s17, 4
      %s1418 = int_to_ptr.hbm [resolvable:$true] %s1417
      %1420 = dma.vmem_to_hbm [thread:$0]  %s1416, 896, %s1418, [#allocation4]
    $region81: #{tpu_custom_call.1} parent=1 // pred_fallthru
      _
    // Predicated region
    $region82: #{tpu_custom_call.1} parent=1 // pred_check
      _
    $region83: #{tpu_custom_call.1} parent=1 // pred_check_branch
      %1422 = sbr.rel (0) target = $region85
    $region84: #{tpu_custom_call.1} parent=1 // pred_region
      %1424 = dma.done [#allocation4], 896
    $region85: #{tpu_custom_call.1} parent=1 // pred_fallthru
      _
    %1425 = vsyncpa [#allocation3], 1
    %1426 = vsyncpa [#allocation6], 1
    %1427 = vsyncpa [#allocation4], 1

</llo_original>
